<compile_context>
chip_gen: v7x
topology: tpu7x:2x2x1
jax: 0.10.0
libtpu: 0.0.40
codegen_flags: <defaults>
</compile_context>

<pallas_src>
import functools
import math

import numpy as np

import jax
import jax.numpy as jnp
from jax.experimental import pallas as pl
from jax.experimental.pallas import tpu as pltpu


def _round_up(x, m):
    return (x + m - 1) // m * m


def _aft_local_band_kernel(starts_ref, eband_ref, kv_ref, kvsum_ref, qs_ref,
                           wp_ref, bp_ref, o_ref, *, hidden_dim, window):
    """One grid step = one (batch row, query tile).

    starts_ref : (n_t,) int32 SMEM   window start (in T) for each query tile
    eband_ref  : (tq, W)             exp(wbias)-1 on the local band, 0 elsewhere
    kv_ref     : (Tp, 2H)            [exp(K)*V | exp(K)] (resident per batch row)
    kvsum_ref  : (1, 2H)  f32        column sum of kv over the (unpadded) sequence
    qs_ref     : (tq, H)  f32        sigmoid(Q) rows of this tile
    wp_ref     : (H, D)              output projection
    bp_ref     : (1, D)   f32
    o_ref      : (tq, D)  f32
    """
    H = hidden_dim
    t = pl.program_id(1)

    start = pl.multiple_of(starts_ref[t], 8)
    kvw = kv_ref[pl.ds(start, window), :]                               # (W, 2H)

    # colsum (full-context, exp(0)=1 part) + banded residual — one wide MXU pass.
    nd = kvsum_ref[...] + jnp.dot(eband_ref[...], kvw,
                                  preferred_element_type=jnp.float32)   # (tq, 2H)
    num = nd[:, :H]
    den = nd[:, H:]

    yt = qs_ref[...] * num * pl.reciprocal(den, approx=True)            # (tq, H) f32
    out = jnp.dot(yt.astype(wp_ref.dtype), wp_ref[...],
                  preferred_element_type=jnp.float32) + bp_ref[...]
    o_ref[...] = out.astype(o_ref.dtype)                                # (tq, D)


def aft_local_forward(x, params, *, s, tq=None, use_bf16=True, stabilize=True):
    """x: (B, T, D) float32.  params: dict (see init_params).  Returns (B, T, D) f32."""
    B, T, D = x.shape
    H = params["wq"].shape[1]
    f32 = jnp.float32
    mxu_dtype = jnp.bfloat16 if use_bf16 else f32
    bpe = 2 if use_bf16 else 4

    # --- per-generation knobs -------------------------------------------------
    try:
        vmem_cap = int(pltpu.get_tpu_info().vmem_capacity_bytes)
    except Exception:  # pragma: no cover - conservative fallback
        vmem_cap = 64 << 20
    if tq is None:
        tq = 512 if vmem_cap >= (96 << 20) else 256      # v5e/v6e: 512, v7x: 256

    AL = 16                                              # sublane quantum (bf16-safe)
    tq = max(AL, min(_round_up(tq, AL), _round_up(T, AL)))
    Tp = _round_up(T, tq)                                # padded sequence length
    n_t = Tp // tq

    # Banded window: width W covers |i-j| < s for a tq-row tile, start aligned to AL.
    W = min(Tp, _round_up(tq + 2 * (s - 1) + AL - 1, AL))
    starts_np = np.clip((np.arange(n_t) * tq - (s - 1)) // AL * AL,
                        0, Tp - W).astype(np.int32)
    starts = jnp.asarray(starts_np)

    # --- XLA-side precompute (fused QKV projection, gating, kv, column sums) ---
    wqkv = jnp.concatenate([params["wq"], params["wk"], params["wv"]], axis=1)
    bqkv = jnp.concatenate([params["bq"], params["bk"], params["bv"]], axis=1)
    qkv = jnp.dot(x.astype(mxu_dtype), wqkv.astype(mxu_dtype),
                  preferred_element_type=f32) + bqkv                     # (B, T, 3H)
    q = qkv[..., :H]
    k = qkv[..., H:2 * H]
    v = qkv[..., 2 * H:]
    if stabilize:
        # Exact invariance of num/den to a per-(batch, channel) shift of K.
        k = k - jnp.max(k, axis=1, keepdims=True)
    ek = jnp.exp(k)
    qs = jax.nn.sigmoid(q)                                               # (B, T, H) f32
    kv = jnp.concatenate([ek * v, ek], axis=-1)                          # (B, T, 2H) f32
    kvsum = jnp.sum(kv, axis=1, keepdims=True)                           # (B, 1, 2H) f32

    pad = Tp - T
    if pad:
        # Padded rows are zero => contribute nothing to colsum or band residual.
        qs = jnp.pad(qs, ((0, 0), (0, pad), (0, 0)))
        kv = jnp.pad(kv, ((0, 0), (0, pad), (0, 0)))
    kv = kv.astype(mxu_dtype)

    # --- batch-invariant banded (exp(wbias) - 1) tiles --------------------------
    t_idx = jnp.arange(n_t, dtype=jnp.int32)
    rows = t_idx[:, None] * tq + jnp.arange(tq, dtype=jnp.int32)[None, :]   # (n_t, tq)
    cols = starts[:, None] + jnp.arange(W, dtype=jnp.int32)[None, :]        # (n_t, W)
    ii = rows[:, :, None]
    jj = cols[:, None, :]
    in_band = (jnp.abs(ii - jj) < s) & (ii < T) & (jj < T)
    wb = params["wbias"][jnp.clip(ii, 0, T - 1), jnp.clip(jj, 0, T - 1)]
    eband = jnp.where(in_band, jnp.expm1(wb), 0.0).astype(mxu_dtype)        # (n_t,tq,W)

    wp = params["wp"].astype(mxu_dtype)
    bp = params["bp"]

    # --- VMEM budget ------------------------------------------------------------
    vmem_est = (2 * Tp * 2 * H * bpe            # kv (double-buffered, resident per row)
                + 2 * tq * W * bpe              # eband tiles
                + 2 * tq * H * 4                # sigmoid(Q) tiles
                + 2 * tq * D * 4                # output tiles
                + 2 * (H * D * bpe + D * 4 + 2 * H * 4))   # weights / biases / kvsum
    vmem_limit = int(min(max(2 * vmem_est, 32 << 20), int(vmem_cap * 0.8)))

    kernel = functools.partial(_aft_local_band_kernel, hidden_dim=H, window=W)

    out = pl.pallas_call(
        kernel,
        out_shape=jax.ShapeDtypeStruct((B, Tp, D), f32),
        grid_spec=pltpu.PrefetchScalarGridSpec(
            num_scalar_prefetch=1,
            grid=(B, n_t),
            in_specs=[
                pl.BlockSpec((None, tq, W), lambda b, t, st: (t, 0, 0)),      # eband
                pl.BlockSpec((None, Tp, 2 * H), lambda b, t, st: (b, 0, 0)),  # kv
                pl.BlockSpec((None, 1, 2 * H), lambda b, t, st: (b, 0, 0)),   # kv colsum
                pl.BlockSpec((None, tq, H), lambda b, t, st: (b, t, 0)),      # sigmoid(Q)
                pl.BlockSpec((H, D), lambda b, t, st: (0, 0)),                # Wproj
                pl.BlockSpec((1, D), lambda b, t, st: (0, 0)),                # bproj
            ],
            out_specs=pl.BlockSpec((None, tq, D), lambda b, t, st: (b, t, 0)),
        ),
        compiler_params=pltpu.CompilerParams(
            dimension_semantics=("parallel", "parallel"),
            vmem_limit_bytes=vmem_limit),
    )(starts, eband, kv, kvsum, qs, wp, bp)

    return out[:, :T, :]


def init_params(key, max_seqlen, dim, hidden_dim):
    """Deterministic synthetic parameters.  Linear weights kept as (in, out)."""
    ks = jax.random.split(key, 9)

    def linear_init(kw, kb, fan_in, fan_out):
        bound = 1.0 / math.sqrt(fan_in)        # mimic nn.Linear default init
        w = jax.random.uniform(kw, (fan_in, fan_out), jnp.float32, -bound, bound)
        b = jax.random.uniform(kb, (1, fan_out), jnp.float32, -bound, bound)
        return w, b

    wq, bq = linear_init(ks[0], ks[1], dim, hidden_dim)
    wk, bk = linear_init(ks[2], ks[3], dim, hidden_dim)
    wv, bv = linear_init(ks[4], ks[5], dim, hidden_dim)
    wp, bp = linear_init(ks[6], ks[7], hidden_dim, dim)
    gain = math.sqrt(6.0 / (max_seqlen + max_seqlen))     # xavier_uniform
    wbias = jax.random.uniform(ks[8], (max_seqlen, max_seqlen), jnp.float32,
                               -gain, gain)
    return dict(wq=wq, bq=bq, wk=wk, bk=bk, wv=wv, bv=bv, wp=wp, bp=bp,
                wbias=wbias)


def aft_local_reference(x, params, *, s):
    """Pure-JAX reference mirroring the PyTorch forward (masked entries -> exp(0)=1)."""
    B, T, D = x.shape
    q = x @ params["wq"] + params["bq"][0]
    k = x @ params["wk"] + params["bk"][0]
    v = x @ params["wv"] + params["bv"][0]
    ii = jnp.arange(T)[:, None]
    jj = jnp.arange(T)[None, :]
    wb = jnp.where(jnp.abs(ii - jj) < s, params["wbias"][:T, :T], 0.0)
    ew = jnp.exp(wb)[None]                                 # (1, T, T)
    ek = jnp.exp(k)
    num = jnp.einsum("btu,buh->bth", jnp.broadcast_to(ew, (B, T, T)), ek * v)
    den = jnp.einsum("btu,buh->bth", jnp.broadcast_to(ew, (B, T, T)), ek)
    yt = jax.nn.sigmoid(q) * (num / den)
    return yt @ params["wp"] + params["bp"][0]


if __name__ == "__main__":
    key = jax.random.PRNGKey(0)

    def run_case(B, T, D, H, max_seqlen, S, tq=None):
        kx, kp = jax.random.split(jax.random.fold_in(key, T))
        x = jax.random.normal(kx, (B, T, D), jnp.float32)
        params = init_params(kp, max_seqlen, D, H)
        ref = aft_local_reference(x, params, s=S)
        scale = jnp.max(jnp.abs(ref)) + 1e-6

        out = jax.block_until_ready(aft_local_forward(x, params, s=S, tq=tq))
        assert out.shape == (B, T, D)
        err = float(jnp.max(jnp.abs(out - ref)) / scale)
        assert err < 2e-2, f"bf16 mismatch vs reference (rel err {err:.3e})"

        out32 = jax.block_until_ready(
            aft_local_forward(x, params, s=S, tq=tq, use_bf16=False))
        err32 = float(jnp.max(jnp.abs(out32 - ref)) / scale)
        assert err32 < 5e-3, f"f32 mismatch vs reference (rel err {err32:.3e})"

    # Small case: band window spans the whole (tiny) sequence.
    run_case(B=2, T=16, D=32, H=32, max_seqlen=16, S=4)
    # Case exercising the banded path (W < Tp), window clamping, and T % tq != 0 padding.
    run_case(B=2, T=72, D=32, H=32, max_seqlen=72, S=4, tq=16)

    print("KERNEL_OK")
</pallas_src>

<mosaic_0001>
module attributes {stable_mosaic.version = 11 : i64} {
  func.func @_aft_local_band_kernel(%arg0: i32, %arg1: i32, %arg2: memref<1xi32, #tpu.memory_space<smem>>, %arg3: memref<1x16x16xbf16, #tpu.memory_space<vmem>>, %arg4: memref<1x16x64xbf16, #tpu.memory_space<vmem>>, %arg5: memref<1x1x64xf32, #tpu.memory_space<vmem>>, %arg6: memref<1x16x32xf32, #tpu.memory_space<vmem>>, %arg7: memref<32x32xbf16, #tpu.memory_space<vmem>>, %arg8: memref<1x32xf32, #tpu.memory_space<vmem>>, %arg9: memref<1x16x32xf32, #tpu.memory_space<vmem>>) attributes {dimension_semantics = [#tpu.dimension_semantics<parallel>, #tpu.dimension_semantics<parallel>], iteration_bounds = array<i64: 2, 1>, scalar_prefetch = 1 : i64, scratch_operands = 0 : i64, tpu.core_type = #tpu.core_type<tc>, window_params = [{transform_indices = @transform_0, window_bounds = array<i64: 1, 16, 16>}, {transform_indices = @transform_1, window_bounds = array<i64: 1, 16, 64>}, {transform_indices = @transform_2, window_bounds = array<i64: 1, 1, 64>}, {transform_indices = @transform_3, window_bounds = array<i64: 1, 16, 32>}, {pipeline_mode = #tpu.pipeline_mode<synchronous>, transform_indices = @transform_4, window_bounds = array<i64: 32, 32>}, {pipeline_mode = #tpu.pipeline_mode<synchronous>, transform_indices = @transform_5, window_bounds = array<i64: 1, 32>}, {transform_indices = @transform_6, window_bounds = array<i64: 1, 16, 32>}]} {
    %0 = arith.index_cast %arg1 : i32 to index
    %1 = memref.load %arg2[%0] : memref<1xi32, #tpu.memory_space<smem>>
    %2 = tpu.assume_multiple %1, 8 : i32
    %c0 = arith.constant 0 : index
    %3 = arith.index_cast %2 : i32 to index
    %c0_0 = arith.constant 0 : index
    %4 = vector.load %arg4[%c0, %3, %c0_0] : memref<1x16x64xbf16, #tpu.memory_space<vmem>>, vector<1x16x64xbf16>
    %5 = vector.shape_cast %4 : vector<1x16x64xbf16> to vector<16x64xbf16>
    %c0_1 = arith.constant 0 : index
    %c0_2 = arith.constant 0 : index
    %c0_3 = arith.constant 0 : index
    %6 = vector.load %arg5[%c0_1, %c0_2, %c0_3] : memref<1x1x64xf32, #tpu.memory_space<vmem>>, vector<1x1x64xf32>
    %7 = vector.shape_cast %6 : vector<1x1x64xf32> to vector<1x64xf32>
    %c0_4 = arith.constant 0 : index
    %c0_5 = arith.constant 0 : index
    %c0_6 = arith.constant 0 : index
    %8 = vector.load %arg3[%c0_4, %c0_5, %c0_6] : memref<1x16x16xbf16, #tpu.memory_space<vmem>>, vector<1x16x16xbf16>
    %9 = vector.shape_cast %8 : vector<1x16x16xbf16> to vector<16x16xbf16>
    %cst = arith.constant dense<0.000000e+00> : vector<16x64xf32>
    %10 = tpu.matmul %9, %5, %cst {dimension_numbers = #tpu.dot_dimension_numbers<[1], [0], [0], [1], [0, 0, 1, 1], [], []>} : vector<16x16xbf16>, vector<16x64xbf16>, vector<16x64xf32> -> vector<16x64xf32>
    %11 = vector.broadcast %7 : vector<1x64xf32> to vector<16x64xf32>
    %12 = arith.addf %11, %10 : vector<16x64xf32>
    %13 = vector.extract_strided_slice %12 {offsets = [0, 0], sizes = [16, 32], strides = [1, 1]} : vector<16x64xf32> to vector<16x32xf32>
    %14 = vector.extract_strided_slice %12 {offsets = [0, 32], sizes = [16, 32], strides = [1, 1]} : vector<16x64xf32> to vector<16x32xf32>
    %c0_7 = arith.constant 0 : index
    %c0_8 = arith.constant 0 : index
    %c0_9 = arith.constant 0 : index
    %15 = vector.load %arg6[%c0_7, %c0_8, %c0_9] : memref<1x16x32xf32, #tpu.memory_space<vmem>>, vector<1x16x32xf32>
    %16 = vector.shape_cast %15 : vector<1x16x32xf32> to vector<16x32xf32>
    %17 = arith.mulf %16, %13 : vector<16x32xf32>
    %18 = tpu.reciprocal %14 {approx = true} : vector<16x32xf32> -> vector<16x32xf32>
    %19 = arith.mulf %17, %18 : vector<16x32xf32>
    %20 = arith.truncf %19 : vector<16x32xf32> to vector<16x32xbf16>
    %c0_10 = arith.constant 0 : index
    %c0_11 = arith.constant 0 : index
    %21 = vector.load %arg7[%c0_10, %c0_11] : memref<32x32xbf16, #tpu.memory_space<vmem>>, vector<32x32xbf16>
    %cst_12 = arith.constant dense<0.000000e+00> : vector<16x32xf32>
    %22 = tpu.matmul %20, %21, %cst_12 {dimension_numbers = #tpu.dot_dimension_numbers<[1], [0], [0], [1], [0, 0, 1, 1], [], []>} : vector<16x32xbf16>, vector<32x32xbf16>, vector<16x32xf32> -> vector<16x32xf32>
    %c0_13 = arith.constant 0 : index
    %c0_14 = arith.constant 0 : index
    %23 = vector.load %arg8[%c0_13, %c0_14] : memref<1x32xf32, #tpu.memory_space<vmem>>, vector<1x32xf32>
    %24 = vector.broadcast %23 : vector<1x32xf32> to vector<16x32xf32>
    %25 = arith.addf %22, %24 : vector<16x32xf32>
    %c0_15 = arith.constant 0 : index
    %c0_16 = arith.constant 0 : index
    %c0_17 = arith.constant 0 : index
    %26 = vector.load %arg9[%c0_15, %c0_16, %c0_17] : memref<1x16x32xf32, #tpu.memory_space<vmem>>, vector<1x16x32xf32>
    %27 = vector.shape_cast %26 : vector<1x16x32xf32> to vector<16x32xf32>
    %28 = vector.shape_cast %25 : vector<16x32xf32> to vector<1x16x32xf32>
    tpu.vector_store %arg9[%c0_15, %c0_16, %c0_17], %28 {strides = array<i32>} : memref<1x16x32xf32, #tpu.memory_space<vmem>>, vector<1x16x32xf32>,
    return
  }
  func.func @transform_0(%arg0: i32, %arg1: i32, %arg2: memref<1xi32, #tpu.memory_space<smem>>) -> (i32, i32, i32) {
    %c0_i32 = arith.constant 0 : i32
    %c0_i32_0 = arith.constant 0 : i32
    %c0_i32_1 = arith.constant 0 : i32
    return %arg1, %c0_i32, %c0_i32_0 : i32, i32, i32
  }
  func.func @transform_1(%arg0: i32, %arg1: i32, %arg2: memref<1xi32, #tpu.memory_space<smem>>) -> (i32, i32, i32) {
    %c0_i32 = arith.constant 0 : i32
    %c0_i32_0 = arith.constant 0 : i32
    %c0_i32_1 = arith.constant 0 : i32
    return %arg0, %c0_i32, %c0_i32_0 : i32, i32, i32
  }
  func.func @transform_2(%arg0: i32, %arg1: i32, %arg2: memref<1xi32, #tpu.memory_space<smem>>) -> (i32, i32, i32) {
    %c0_i32 = arith.constant 0 : i32
    %c0_i32_0 = arith.constant 0 : i32
    %c0_i32_1 = arith.constant 0 : i32
    return %arg0, %c0_i32, %c0_i32_0 : i32, i32, i32
  }
  func.func @transform_3(%arg0: i32, %arg1: i32, %arg2: memref<1xi32, #tpu.memory_space<smem>>) -> (i32, i32, i32) {
    %c0_i32 = arith.constant 0 : i32
    %c0_i32_0 = arith.constant 0 : i32
    return %arg0, %arg1, %c0_i32 : i32, i32, i32
  }
  func.func @transform_4(%arg0: i32, %arg1: i32, %arg2: memref<1xi32, #tpu.memory_space<smem>>) -> (i32, i32) {
    %c0_i32 = arith.constant 0 : i32
    %c0_i32_0 = arith.constant 0 : i32
    %c0_i32_1 = arith.constant 0 : i32
    return %c0_i32, %c0_i32_0 : i32, i32
  }
  func.func @transform_5(%arg0: i32, %arg1: i32, %arg2: memref<1xi32, #tpu.memory_space<smem>>) -> (i32, i32) {
    %c0_i32 = arith.constant 0 : i32
    %c0_i32_0 = arith.constant 0 : i32
    %c0_i32_1 = arith.constant 0 : i32
    return %c0_i32, %c0_i32_0 : i32, i32
  }
  func.func @transform_6(%arg0: i32, %arg1: i32, %arg2: memref<1xi32, #tpu.memory_space<smem>>) -> (i32, i32, i32) {
    %c0_i32 = arith.constant 0 : i32
    %c0_i32_0 = arith.constant 0 : i32
    return %arg0, %arg1, %c0_i32 : i32, i32, i32
  }
}

</mosaic_0001>

<llo_original>
// kernel: tpu_custom_call.1
$region0: #{tpu_custom_call.1}
  #allocation0 [shape = 'u32[]', space=smem, size = 0x4, offset = 0x4, fixed_abs, tag = 'smem constant byte address 0x4 - core index']
  #allocation1 [shape = 'u32[144,128]{1,0:T(1,128)}', space=vmem, size = 0x12000, scoped, tag = 'internal scratch']
  #allocation2 [shape = 's32[1]{0}', space=sflag, size = 0x4, scoped, tag = 'scoped memory for tpu_custom_call.1']
  #allocation3 [shape = 's32[1]{0:T(128)S(6)}', space=smem, size = 0x200, scoped, tag = 'prefetched SMEM operand 0']
  %s0 = inlined_call_operand.<no memory space> [shape: s32[1], index: 0, kind: input, shape index: {}]
  %s1 = inlined_call_operand.hbm [shape: bf16[1,16,16], index: 1, kind: input, shape index: {}]
  %s2 = inlined_call_operand.hbm [shape: bf16[2,16,64], index: 2, kind: input, shape index: {}]
  %s3 = inlined_call_operand.vmem [shape: f32[2,1,64], index: 3, kind: input, shape index: {}]
  %s4 = inlined_call_operand.hbm [shape: f32[2,16,32], index: 4, kind: input, shape index: {}]
  %s5 = inlined_call_operand.vmem [shape: bf16[32,32], index: 5, kind: input, shape index: {}]
  %s6 = inlined_call_operand.vmem [shape: f32[1,32], index: 6, kind: input, shape index: {}]
  %s7 = inlined_call_operand.hbm [shape: f32[2,16,32], index: 7, kind: output, shape index: {}]
  %s8 = sld [smem:[#allocation0]]
  $region69: #{tpu_custom_call.1} parent=0
    _
  %s10 = ssub.s32 1, %s8
  %s11 = scalar_select 0, %s10, %s8
  %12 = sst [smem:[#allocation3]] %s0
  $region1: #{tpu_custom_call.1} parent=0
    #allocation4 [shape = 'u8[4096]{0}', space=vmem, size = 0x1000, scoped, tag = 'input window, operand 1, single buffered']
    #allocation5 [shape = 's32[2]{0}', space=sflag, size = 0x8, scoped, tag = 'scoped memory for tpu_custom_call.1']
    #allocation6 [shape = 's32[2]{0}', space=sflag, size = 0x8, scoped, tag = 'scoped memory for tpu_custom_call.1']
    #allocation7 [shape = 'u8[8192]{0}', space=vmem, size = 0x2000, scoped, tag = 'input window, operand 2']
    #allocation8 [shape = 's32[2]{0}', space=sflag, size = 0x8, scoped, tag = 'scoped memory for tpu_custom_call.1']
    #allocation9 [shape = 'u8[16384]{0}', space=vmem, size = 0x4000, scoped, tag = 'input window, operand 4']
    #allocation10 [shape = 'u8[16384]{0}', space=vmem, size = 0x4000, scoped, tag = 'output window, operand 0']
    %13 = vsyncpa [#allocation5], 0
    %14 = vsyncpa [#allocation8], 0
    %s15 = scalar_lea.sflag [#allocation8], 1
    %16 = vsyncpa %s15, 0
    %17 = vsyncpa [#allocation6], 0
    %s18 = scalar_lea.sflag [#allocation6], 1
    %19 = vsyncpa %s18, 0
    loop: start=0, step=1, limit=4
    $region2: #{tpu_custom_call.1} parent=1 // loop_pre_header
      _
    $region3: #{tpu_custom_call.1} parent=1 // loop_header
      %s21 = sphi 0, %s25
      %p22 = scmp.ge.s32.totalorder %s21, 4
      %s28 = sphi 0, %s40
      %s29 = sphi 0, %s36
      %s30 = sphi 0, %s28
      %s31 = sphi 0, %s29
      %s32 = sphi 0, %s30
      %s33 = sphi 0, %s31
      %s43 = sphi 0, %s45
      %s46 = sphi 0, %s43
      %s47 = sphi 0, %s46
      %s63 = sphi 0, %s47
      %s69 = sphi 0, %s71
      %s72 = sphi 0, %s69
      %s73 = sphi 0, %s72
      %s89 = sphi 0, %s73
      %s95 = sphi 0, %s97
      %s98 = sphi 0, %s95
      %s99 = sphi 0, %s98
      %s115 = sphi 0, %s99
      %s123 = sphi 0, %s125
      %s126 = sphi 0, %s123
      %s127 = sphi 0, %s126
      %s143 = sphi 0, %s127
      %s147 = sphi 0, %s147
      %s149 = sphi 0, %s147
      %s150 = sphi 0, %s149
      %s164 = sphi 0, %s150
      %s168 = sphi 0, %s168
      %s170 = sphi 0, %s168
      %s171 = sphi 0, %s170
      %s185 = sphi 0, %s171
      %s193 = sphi 0, %s195
      %s196 = sphi 0, %s193
      %s197 = sphi 0, %s196
      %s213 = sphi 0, %s197
    $region4: #{tpu_custom_call.1} parent=1 // loop_header_branch
      %24 = sbr.rel (%p22) target = $region8
    $region5: #{tpu_custom_call.1} parent=1 // loop_body
      %s26 = ssub.s32 %s21, 1
      %s27 = ssub.s32 %s21, 2
      %s34 = sadd.s32 1, %s29
      %p35 = scmp.ge.s32.totalorder %s34, 1
      %s36 = scalar_select %p35, 0, %s34
      %s37 = sadd.s32 1, %s28
      %s38 = scalar_select %p35, %s37, %s28
      %p39 = scmp.ge.s32.totalorder %s38, 2
      %s40 = scalar_select %p39, 0, %s38
      %s41 = ssub.s32 %s29, %s36
      %p42 = scmp.eq.s32.totalorder %s41, 0
      %s44 = sadd.s32 %s43, 1
      %s45 = scalar_select %p42, %s43, %s44
      %p48 = pneg %p42
      %p49 = scmp.eq.s32.totalorder %s21, 1
      %p50 = por %p48, %p49
      %p51 = scmp.ne.s32.totalorder %s43, %s46
      %p52 = scmp.eq.s32.totalorder %s21, 0
      %p53 = por %p51, %p52
      %p54 = scmp.ne.s32.totalorder %s43, %s46
      %p55 = scmp.eq.s32.totalorder %s26, 1
      %p56 = por %p54, %p55
      %p57 = scmp.ne.s32.totalorder %s46, %s47
      %p58 = scmp.eq.s32.totalorder %s26, 0
      %p59 = por %p57, %p58
      %p60 = scmp.ne.s32.totalorder %s46, %s47
      %p61 = scmp.eq.s32.totalorder %s27, 1
      %p62 = por %p60, %p61
      %p64 = scmp.ne.s32.totalorder %s47, %s63
      %p65 = scmp.eq.s32.totalorder %s27, 0
      %p66 = por %p64, %p65
      %s67 = ssub.s32 %s28, %s40
      %p68 = scmp.eq.s32.totalorder %s67, 0
      %s70 = sadd.s32 %s69, 1
      %s71 = scalar_select %p68, %s69, %s70
      %p74 = pneg %p68
      %p75 = scmp.eq.s32.totalorder %s21, 1
      %p76 = por %p74, %p75
      %p77 = scmp.ne.s32.totalorder %s69, %s72
      %p78 = scmp.eq.s32.totalorder %s21, 0
      %p79 = por %p77, %p78
      %p80 = scmp.ne.s32.totalorder %s69, %s72
      %p81 = scmp.eq.s32.totalorder %s26, 1
      %p82 = por %p80, %p81
      %p83 = scmp.ne.s32.totalorder %s72, %s73
      %p84 = scmp.eq.s32.totalorder %s26, 0
      %p85 = por %p83, %p84
      %p86 = scmp.ne.s32.totalorder %s72, %s73
      %p87 = scmp.eq.s32.totalorder %s27, 1
      %p88 = por %p86, %p87
      %p90 = scmp.ne.s32.totalorder %s73, %s89
      %p91 = scmp.eq.s32.totalorder %s27, 0
      %p92 = por %p90, %p91
      %s93 = ssub.s32 %s28, %s40
      %p94 = scmp.eq.s32.totalorder %s93, 0
      %s96 = sadd.s32 %s95, 1
      %s97 = scalar_select %p94, %s95, %s96
      %p100 = pneg %p94
      %p101 = scmp.eq.s32.totalorder %s21, 1
      %p102 = por %p100, %p101
      %p103 = scmp.ne.s32.totalorder %s95, %s98
      %p104 = scmp.eq.s32.totalorder %s21, 0
      %p105 = por %p103, %p104
      %p106 = scmp.ne.s32.totalorder %s95, %s98
      %p107 = scmp.eq.s32.totalorder %s26, 1
      %p108 = por %p106, %p107
      %p109 = scmp.ne.s32.totalorder %s98, %s99
      %p110 = scmp.eq.s32.totalorder %s26, 0
      %p111 = por %p109, %p110
      %p112 = scmp.ne.s32.totalorder %s98, %s99
      %p113 = scmp.eq.s32.totalorder %s27, 1
      %p114 = por %p112, %p113
      %p116 = scmp.ne.s32.totalorder %s99, %s115
      %p117 = scmp.eq.s32.totalorder %s27, 0
      %p118 = por %p116, %p117
      %s119 = ssub.s32 %s28, %s40
      %s120 = ssub.s32 %s29, %s36
      %s121 = sor.u32 %s119, %s120
      %p122 = scmp.eq.s32.totalorder %s121, 0
      %s124 = sadd.s32 %s123, 1
      %s125 = scalar_select %p122, %s123, %s124
      %p128 = pneg %p122
      %p129 = scmp.eq.s32.totalorder %s21, 1
      %p130 = por %p128, %p129
      %p131 = scmp.ne.s32.totalorder %s123, %s126
      %p132 = scmp.eq.s32.totalorder %s21, 0
      %p133 = por %p131, %p132
      %p134 = scmp.ne.s32.totalorder %s123, %s126
      %p135 = scmp.eq.s32.totalorder %s26, 1
      %p136 = por %p134, %p135
      %p137 = scmp.ne.s32.totalorder %s126, %s127
      %p138 = scmp.eq.s32.totalorder %s26, 0
      %p139 = por %p137, %p138
      %p140 = scmp.ne.s32.totalorder %s126, %s127
      %p141 = scmp.eq.s32.totalorder %s27, 1
      %p142 = por %p140, %p141
      %p144 = scmp.ne.s32.totalorder %s127, %s143
      %p145 = scmp.eq.s32.totalorder %s27, 0
      %p146 = por %p144, %p145
      %s148 = sadd.s32 %s147, 1
      %p151 = scmp.eq.s32.totalorder %s21, 1
      %p152 = scmp.ne.s32.totalorder %s147, %s149
      %p153 = scmp.eq.s32.totalorder %s21, 0
      %p154 = por %p152, %p153
      %p155 = scmp.ne.s32.totalorder %s147, %s149
      %p156 = scmp.eq.s32.totalorder %s26, 1
      %p157 = por %p155, %p156
      %p158 = scmp.ne.s32.totalorder %s149, %s150
      %p159 = scmp.eq.s32.totalorder %s26, 0
      %p160 = por %p158, %p159
      %p161 = scmp.ne.s32.totalorder %s149, %s150
      %p162 = scmp.eq.s32.totalorder %s27, 1
      %p163 = por %p161, %p162
      %p165 = scmp.ne.s32.totalorder %s150, %s164
      %p166 = scmp.eq.s32.totalorder %s27, 0
      %p167 = por %p165, %p166
      %s169 = sadd.s32 %s168, 1
      %p172 = scmp.eq.s32.totalorder %s21, 1
      %p173 = scmp.ne.s32.totalorder %s168, %s170
      %p174 = scmp.eq.s32.totalorder %s21, 0
      %p175 = por %p173, %p174
      %p176 = scmp.ne.s32.totalorder %s168, %s170
      %p177 = scmp.eq.s32.totalorder %s26, 1
      %p178 = por %p176, %p177
      %p179 = scmp.ne.s32.totalorder %s170, %s171
      %p180 = scmp.eq.s32.totalorder %s26, 0
      %p181 = por %p179, %p180
      %p182 = scmp.ne.s32.totalorder %s170, %s171
      %p183 = scmp.eq.s32.totalorder %s27, 1
      %p184 = por %p182, %p183
      %p186 = scmp.ne.s32.totalorder %s171, %s185
      %p187 = scmp.eq.s32.totalorder %s27, 0
      %p188 = por %p186, %p187
      %s189 = ssub.s32 %s28, %s40
      %s190 = ssub.s32 %s29, %s36
      %s191 = sor.u32 %s189, %s190
      %p192 = scmp.eq.s32.totalorder %s191, 0
      %s194 = sadd.s32 %s193, 1
      %s195 = scalar_select %p192, %s193, %s194
      %p198 = pneg %p192
      %p199 = scmp.eq.s32.totalorder %s21, 1
      %p200 = por %p198, %p199
      %p201 = scmp.ne.s32.totalorder %s193, %s196
      %p202 = scmp.eq.s32.totalorder %s21, 0
      %p203 = por %p201, %p202
      %p204 = scmp.ne.s32.totalorder %s193, %s196
      %p205 = scmp.eq.s32.totalorder %s26, 1
      %p206 = por %p204, %p205
      %p207 = scmp.ne.s32.totalorder %s196, %s197
      %p208 = scmp.eq.s32.totalorder %s26, 0
      %p209 = por %p207, %p208
      %p210 = scmp.ne.s32.totalorder %s196, %s197
      %p211 = scmp.eq.s32.totalorder %s27, 1
      %p212 = por %p210, %p211
      %p214 = scmp.ne.s32.totalorder %s197, %s213
      %p215 = scmp.eq.s32.totalorder %s27, 0
      %p216 = por %p214, %p215
      %p217 = scmp.le.s32.totalorder 1, %s21
      %p218 = scmp.lt.s32.totalorder %s21, 3
      %p219 = pnand %p217, %p218
      %p220 = pneg %p219
      // Predicated region
      $region9: #{tpu_custom_call.1} parent=5 // pred_check
        _
      $region10: #{tpu_custom_call.1} parent=5 // pred_check_branch
        %222 = sbr.rel (%p219) target = $region12
      $region11: #{tpu_custom_call.1} parent=5 // pred_region
        %s223 = ssub.s32 %s21, 1
        // Predicated region
        $region13: #{tpu_custom_call.1} parent=11 // pred_check
          %p224 = pneg %p59
        $region14: #{tpu_custom_call.1} parent=11 // pred_check_branch
          %226 = sbr.rel (%p224) target = $region16
        $region15: #{tpu_custom_call.1} parent=11 // pred_region
          %s228 = ssub.s32 128, 128
          %229 = vsyncadd [#allocation5], %s228
          %s230 = smul.addr %s31, 2
          %s231 = smul.addr %s230, 64
          %s232 = scalar_lea.hbm %s1, %s231
          %s233 = sshll.u32 [#allocation4], 4
          %s234 = int_to_ptr.vmem [resolvable:$true] %s233
          %239 = dma.hbm_to_vmem [thread:$0]  %s232, 128, %s234, [#allocation5], 64, 64, 4
        $region16: #{tpu_custom_call.1} parent=11 // pred_fallthru
          _
        // Predicated region
        $region17: #{tpu_custom_call.1} parent=11 // pred_check
          %p240 = pneg %p160
        $region18: #{tpu_custom_call.1} parent=11 // pred_check_branch
          %242 = sbr.rel (%p240) target = $region20
        $region19: #{tpu_custom_call.1} parent=11 // pred_region
          _
        $region20: #{tpu_custom_call.1} parent=11 // pred_fallthru
          _
        // Predicated region
        $region21: #{tpu_custom_call.1} parent=11 // pred_check
          %p243 = pneg %p181
        $region22: #{tpu_custom_call.1} parent=11 // pred_check_branch
          %245 = sbr.rel (%p243) target = $region24
        $region23: #{tpu_custom_call.1} parent=11 // pred_region
          _
        $region24: #{tpu_custom_call.1} parent=11 // pred_fallthru
          _
      $region12: #{tpu_custom_call.1} parent=5 // pred_fallthru
        _
      %p246 = scmp.lt.s32.totalorder %s21, 2
      // Predicated region
      $region25: #{tpu_custom_call.1} parent=5 // pred_check
        %p247 = pneg %p246
      $region26: #{tpu_custom_call.1} parent=5 // pred_check_branch
        %249 = sbr.rel (%p247) target = $region28
      $region27: #{tpu_custom_call.1} parent=5 // pred_region
        // Predicated region
        $region29: #{tpu_custom_call.1} parent=27 // pred_check
          %p250 = pneg %p79
        $region30: #{tpu_custom_call.1} parent=27 // pred_check_branch
          %252 = sbr.rel (%p250) target = $region32
        $region31: #{tpu_custom_call.1} parent=27 // pred_region
          %s253 = sand.u32 %s21, 1
          %s254 = scalar_lea.sflag [#allocation8], %s253
          %s255 = sand.u32 %s69, 1
          %s256 = smul.addr %s255, 8
          %s257 = scalar_lea.vmem [#allocation7], %s256
          %s259 = ssub.s32 128, 128
          %260 = vsyncadd %s254, %s259
          %s261 = smul.addr %s28, 2
          %s262 = smul.addr %s261, 64
          %s263 = scalar_lea.hbm %s2, %s262
          %s264 = sshll.u32 %s257, 4
          %s265 = int_to_ptr.vmem [resolvable:$true] %s264
          %270 = dma.hbm_to_vmem [thread:$0]  %s263, 128, %s265, %s254, 64, 64, 4
        $region32: #{tpu_custom_call.1} parent=27 // pred_fallthru
          _
        // Predicated region
        $region33: #{tpu_custom_call.1} parent=27 // pred_check
          %p271 = pneg %p105
        $region34: #{tpu_custom_call.1} parent=27 // pred_check_branch
          %273 = sbr.rel (%p271) target = $region36
        $region35: #{tpu_custom_call.1} parent=27 // pred_region
          %p274 = scmp.lt.s32.totalorder %s28, 1
          %s275 = scalar_select %p274, %s28, 1
          %s276 = scalar_lea.vmem %s3, %s275
        $region36: #{tpu_custom_call.1} parent=27 // pred_fallthru
          _
        // Predicated region
        $region37: #{tpu_custom_call.1} parent=27 // pred_check
          %p277 = pneg %p133
        $region38: #{tpu_custom_call.1} parent=27 // pred_check_branch
          %279 = sbr.rel (%p277) target = $region40
        $region39: #{tpu_custom_call.1} parent=27 // pred_region
          %s280 = sand.u32 %s21, 1
          %s281 = scalar_lea.sflag [#allocation8], %s280
          %s282 = sand.u32 %s123, 1
          %s283 = smul.addr %s282, 16
          %s284 = scalar_lea.vmem [#allocation9], %s283
          %s285 = smul.u32 2, %s29
          %s287 = ssub.s32 256, 256
          %288 = vsyncadd %s281, %s287
          %s289 = smul.addr %s28, 2
          %s290 = sadd.s32 %s285, %s289
          %s291 = smul.addr %s290, 128
          %s292 = scalar_lea.hbm %s4, %s291
          %s293 = sshll.u32 %s284, 4
          %s294 = int_to_ptr.vmem [resolvable:$true] %s293
          %299 = dma.hbm_to_vmem [thread:$0]  %s292, 256, %s294, %s281, 128, 128, 8
        $region40: #{tpu_custom_call.1} parent=27 // pred_fallthru
          _
      $region28: #{tpu_custom_call.1} parent=5 // pred_fallthru
        _
      %p300 = scmp.le.s32.totalorder 1, %s21
      %p301 = scmp.lt.s32.totalorder %s21, 3
      %p302 = pnand %p300, %p301
      %p303 = pneg %p302
      // Predicated region
      $region41: #{tpu_custom_call.1} parent=5 // pred_check
        _
      $region42: #{tpu_custom_call.1} parent=5 // pred_check_branch
        %305 = sbr.rel (%p302) target = $region44
      $region43: #{tpu_custom_call.1} parent=5 // pred_region
        %s306 = ssub.s32 %s21, 1
        // Predicated region
        $region45: #{tpu_custom_call.1} parent=43 // pred_check
          %p307 = pneg %p59
        $region46: #{tpu_custom_call.1} parent=43 // pred_check_branch
          %309 = sbr.rel (%p307) target = $region48
        $region47: #{tpu_custom_call.1} parent=43 // pred_region
          %310 = dma.done [#allocation5], 128
        $region48: #{tpu_custom_call.1} parent=43 // pred_fallthru
          _
        %s311 = sand.u32 %s26, 1
        %s312 = scalar_lea.sflag [#allocation8], %s311
        %s313 = sand.u32 %s72, 1
        %s314 = smul.addr %s313, 8
        %s315 = scalar_lea.vmem [#allocation7], %s314
        // Predicated region
        $region49: #{tpu_custom_call.1} parent=43 // pred_check
          %p316 = pneg %p85
        $region50: #{tpu_custom_call.1} parent=43 // pred_check_branch
          %318 = sbr.rel (%p316) target = $region52
        $region51: #{tpu_custom_call.1} parent=43 // pred_region
          %319 = dma.done %s312, 128
        $region52: #{tpu_custom_call.1} parent=43 // pred_fallthru
          _
        %s320 = sand.u32 %s26, 1
        %s321 = scalar_lea.sflag [#allocation8], %s320
        %s322 = sand.u32 %s126, 1
        %s323 = smul.addr %s322, 16
        %s324 = scalar_lea.vmem [#allocation9], %s323
        // Predicated region
        $region53: #{tpu_custom_call.1} parent=43 // pred_check
          %p325 = pneg %p139
        $region54: #{tpu_custom_call.1} parent=43 // pred_check_branch
          %327 = sbr.rel (%p325) target = $region56
        $region55: #{tpu_custom_call.1} parent=43 // pred_region
          %328 = dma.done %s321, 256
        $region56: #{tpu_custom_call.1} parent=43 // pred_fallthru
          _
        %p329 = pneg %p59
        %p330 = pneg %p56
        %s331 = sand.u32 %s26, 1
        %s332 = scalar_lea.sflag [#allocation8], %s331
        %s333 = sand.u32 %s72, 1
        %s334 = smul.addr %s333, 8
        %s335 = scalar_lea.vmem [#allocation7], %s334
        %p336 = pneg %p85
        %p337 = pneg %p82
        %p338 = scmp.lt.s32.totalorder %s30, 1
        %s339 = scalar_select %p338, %s30, 1
        %s340 = scalar_lea.vmem %s3, %s339
        %p341 = pneg %p111
        %p342 = pneg %p108
        %s343 = sand.u32 %s26, 1
        %s344 = scalar_lea.sflag [#allocation8], %s343
        %s345 = sand.u32 %s126, 1
        %s346 = smul.addr %s345, 16
        %s347 = scalar_lea.vmem [#allocation9], %s346
        %p348 = pneg %p139
        %p349 = pneg %p136
        %p350 = pneg %p160
        %p351 = pneg %p157
        %p352 = pneg %p181
        %p353 = pneg %p178
        %p354 = pneg %p209
        %p355 = pneg %p206
        %s356 = sand.u32 %s196, 1
        %s357 = scalar_lea.sflag [#allocation6], %s356
        %s358 = sand.u32 %s196, 1
        %s359 = smul.addr %s358, 16
        %s360 = scalar_lea.vmem [#allocation10], %s359
        %p361 = scmp.lt.s32.totalorder %s30, 1
        %s362 = scalar_select %p361, %s30, 1
        %s363 = scalar_lea.vmem %s3, %s362
        %s364 = smul.u32 2, %s31
        %s365 = smul.u32 2, %s31
        %s367 = sld [smem:[#allocation3 + %s31]]
        %s368 = sshra.s32 %s367, 3
        %s369 = sand.u32 %s367, 7
        %s370 = smul.addr %s368, 4
        %s371 = scalar_lea.vmem %s315, %s370 [#allocation7]
        %v372 = vld [vmem:[%s371] sm:$0xf]
        %v373 = vld [vmem:[%s371 + $0x4] sm:$0xf]
        %v374 = vld [vmem:[%s363] sm:$0x1]
        %v375 = vld [vmem:[#allocation4] sm:$0xf]
        %v376 = vld [vmem:[#allocation4 + $0x4] sm:$0xf]
        %v379 = vunpack.c.l.b16 %v375
        %v380 = vunpack.c.l.b16 %v376
        %v381 = vpack.c.b16 %v380, %v379
        %v384 = vunpack.c.l.b16 %v372
        %v385 = vunpack.c.l.b16 %v373
        %v386 = vpack.c.b16 %v385, %v384
        %vm388 = vcmask 130048
        %v390 = vsel %vm388, %v381, 0
        %392 = vmatprep.subr.bf16.mxu0 0
        %393 = vmatpush1.bf16.msra.mxu0 %v386
        %394 = vmatprep.subr.bf16.mxu0 0
        %395 = vmatpush1.bf16.msra.mxu0 0
        %396 = vmatprep.subr.bf16.mxu0 0
        %397 = vmatpush1.bf16.msra.mxu0 0
        %398 = vmatprep.subr.bf16.mxu0 0
        %399 = vmatpush1.bf16.msra.mxu0 0
        %400 = vmatprep.subr.bf16.mxu0 0
        %401 = vmatpush1.bf16.msra.mxu0 0
        %402 = vmatprep.subr.bf16.mxu0 0
        %403 = vmatpush1.bf16.msra.mxu0 0
        %404 = vmatprep.subr.bf16.mxu0 0
        %405 = vmatpush1.bf16.msra.mxu0 0
        %406 = vmatprep.subr.bf16.mxu0 0
        %407 = vmatpush1.bf16.msra.mxu0 0
        %408 = vmatprep.subr.bf16.mxu0 0
        %409 = vmatpush1.bf16.msra.mxu0 0
        %410 = vmatprep.subr.bf16.mxu0 0
        %411 = vmatpush1.bf16.msra.mxu0 0
        %412 = vmatprep.subr.bf16.mxu0 0
        %413 = vmatpush1.bf16.msra.mxu0 0
        %414 = vmatprep.subr.bf16.mxu0 0
        %415 = vmatpush1.bf16.msra.mxu0 0
        %416 = vmatprep.subr.bf16.mxu0 0
        %417 = vmatpush1.bf16.msra.mxu0 0
        %418 = vmatprep.subr.bf16.mxu0 0
        %419 = vmatpush1.bf16.msra.mxu0 0
        %420 = vmatprep.subr.bf16.mxu0 0
        %421 = vmatpush1.bf16.msra.mxu0 0
        %422 = vmatprep.subr.bf16.mxu0 0
        %423 = vmatpush1.bf16.msra.mxu0 0
        %424 = vmatprep.mubr.bf16.mxu0 0
        %425 = vmatmul.mubr.bf16.gmra.mrb[0].mxu0 %v390
        %v426 = vpop.f32.mrb[0].mxu0
        %v427 = vadd.f32 0.0, %v426
        %v428 = vpop.f32.mrb[0].mxu0
        %v429 = vpop.f32.mrb[0].mxu0
        %v430 = vadd.f32 0.0, %v429
        %v431 = vpop.f32.mrb[0].mxu0
        %432 = vdwg.mxu0
        %v434 = vlaneseq
        %v435 = vshrl.u32 %v434, 7
        %v436 = vsub.s32 0, %v435
        %v437 = vrot.slane %v374, %v436
        %v439 = vadd.f32 %v437, %v427
        %v440 = vadd.f32 %v437, %v430
        %v441 = vld [vmem:[%s324] sm:$0xff]
        %v442 = vld [vmem:[%s324 + $0x8] sm:$0xff]
        %v443 = vmul.f32 %v441, %v439
        %v444 = vmul.f32 %v442, %v440
        %v445 = vrcp.pop %v439
        %v446 = vrcp.pop %v440
        %449 = vrot.lane.b32.xlu0 %v445, 96
        %v450 = vpop.permute.xlu0 %449
        %451 = vrot.lane.b32.xlu0 %v446, 96
        %v452 = vpop.permute.xlu0 %451
        %v455 = vmul.f32 %v443, %v450
        %v456 = vmul.f32 %v444, %v452
        %v457 = vpack.c.bf16 %v456, %v455
        %v458 = vld [vmem:[%s5] sm:$0xf]
        %v459 = vld [vmem:[%s5 + $0x4] sm:$0xf]
        %v460 = vld [vmem:[%s5 + $0x8] sm:$0xf]
        %v461 = vld [vmem:[%s5 + $0xc] sm:$0xf]
        %v462 = vld [vmem:[%s6] sm:$0x1]
        %v464 = vlaneseq
        %v465 = vshrl.u32 %v464, 7
        %v466 = vsub.s32 0, %v465
        %v467 = vrot.slane %v462, %v466
        %v473 = vunpack.c.l.b16 %v458
        %v474 = vunpack.c.l.b16 %v459
        %v475 = vunpack.c.l.b16 %v460
        %v476 = vunpack.c.l.b16 %v461
        %v477 = vpack.c.b16 %v474, %v473
        %v478 = vpack.c.b16 %v476, %v475
        %vm481 = vcmask 261120
        %v483 = vsel %vm481, %v457, 0
        %485 = vmatprep.subr.bf16.mxu0 0
        %486 = vmatpush1.bf16.msra.mxu0 %v477
        %487 = vmatprep.subr.bf16.mxu0 0
        %488 = vmatpush1.bf16.msra.mxu0 %v478
        %489 = vmatprep.subr.bf16.mxu0 0
        %490 = vmatpush1.bf16.msra.mxu0 0
        %491 = vmatprep.subr.bf16.mxu0 0
        %492 = vmatpush1.bf16.msra.mxu0 0
        %493 = vmatprep.subr.bf16.mxu0 0
        %494 = vmatpush1.bf16.msra.mxu0 0
        %495 = vmatprep.subr.bf16.mxu0 0
        %496 = vmatpush1.bf16.msra.mxu0 0
        %497 = vmatprep.subr.bf16.mxu0 0
        %498 = vmatpush1.bf16.msra.mxu0 0
        %499 = vmatprep.subr.bf16.mxu0 0
        %500 = vmatpush1.bf16.msra.mxu0 0
        %501 = vmatprep.subr.bf16.mxu0 0
        %502 = vmatpush1.bf16.msra.mxu0 0
        %503 = vmatprep.subr.bf16.mxu0 0
        %504 = vmatpush1.bf16.msra.mxu0 0
        %505 = vmatprep.subr.bf16.mxu0 0
        %506 = vmatpush1.bf16.msra.mxu0 0
        %507 = vmatprep.subr.bf16.mxu0 0
        %508 = vmatpush1.bf16.msra.mxu0 0
        %509 = vmatprep.subr.bf16.mxu0 0
        %510 = vmatpush1.bf16.msra.mxu0 0
        %511 = vmatprep.subr.bf16.mxu0 0
        %512 = vmatpush1.bf16.msra.mxu0 0
        %513 = vmatprep.subr.bf16.mxu0 0
        %514 = vmatpush1.bf16.msra.mxu0 0
        %515 = vmatprep.subr.bf16.mxu0 0
        %516 = vmatpush1.bf16.msra.mxu0 0
        %517 = vmatprep.mubr.bf16.mxu0 0
        %518 = vmatmul.mubr.bf16.gmra.mrb[0].mxu0 %v483
        %v519 = vpop.f32.mrb[0].mxu0
        %v520 = vadd.f32 %v467, %v519
        %v521 = vpop.f32.mrb[0].mxu0
        %v522 = vpop.f32.mrb[0].mxu0
        %v523 = vadd.f32 %v467, %v522
        %v524 = vpop.f32.mrb[0].mxu0
        %525 = vdwg.mxu0
        %526 = vst.msk [vmem:[%s360] sm:$0xff] %vm481, %v520
        %527 = vst.msk [vmem:[%s360 + $0x8] sm:$0xff] %vm481, %v523
        %s528 = sand.u32 %s196, 1
        %s529 = scalar_lea.sflag [#allocation6], %s528
        %s530 = sand.u32 %s196, 1
        %s531 = smul.addr %s530, 16
        %s532 = scalar_lea.vmem [#allocation10], %s531
        // Predicated region
        $region57: #{tpu_custom_call.1} parent=43 // pred_check
          %p533 = pneg %p206
        $region58: #{tpu_custom_call.1} parent=43 // pred_check_branch
          %535 = sbr.rel (%p533) target = $region60
        $region59: #{tpu_custom_call.1} parent=43 // pred_region
          %s536 = smul.u32 2, %s31
          %s538 = ssub.s32 256, 256
          %539 = vsyncadd %s529, %s538
          %s540 = smul.addr %s30, 2
          %s541 = sadd.s32 %s536, %s540
          %s542 = smul.addr %s541, 128
          %s543 = scalar_lea.hbm %s7, %s542
          %s544 = sshll.u32 %s532, 4
          %s545 = int_to_ptr.vmem [resolvable:$true] %s544
          %550 = dma.vmem_to_hbm [thread:$0]  %s545, 256, %s543, %s529, 128, 128, 8
        $region60: #{tpu_custom_call.1} parent=43 // pred_fallthru
          _
      $region44: #{tpu_custom_call.1} parent=5 // pred_fallthru
        _
      %p551 = scmp.le.s32.totalorder 2, %s21
      // Predicated region
      $region61: #{tpu_custom_call.1} parent=5 // pred_check
        %p552 = pneg %p551
      $region62: #{tpu_custom_call.1} parent=5 // pred_check_branch
        %554 = sbr.rel (%p552) target = $region64
      $region63: #{tpu_custom_call.1} parent=5 // pred_region
        %s555 = ssub.s32 %s21, 2
        // Predicated region
        $region65: #{tpu_custom_call.1} parent=63 // pred_check
          %p556 = pneg %p212
        $region66: #{tpu_custom_call.1} parent=63 // pred_check_branch
          %558 = sbr.rel (%p556) target = $region68
        $region67: #{tpu_custom_call.1} parent=63 // pred_region
          %s559 = sand.u32 %s197, 1
          %s560 = scalar_lea.sflag [#allocation6], %s559
          %s561 = sand.u32 %s197, 1
          %s562 = smul.addr %s561, 16
          %s563 = scalar_lea.vmem [#allocation10], %s562
          %564 = dma.done %s560, 256
        $region68: #{tpu_custom_call.1} parent=63 // pred_fallthru
          _
      $region64: #{tpu_custom_call.1} parent=5 // pred_fallthru
        _
    $region6: #{tpu_custom_call.1} parent=1 // loop_footer
      %s25 = sadd.s32 1, %s21
    $region7: #{tpu_custom_call.1} parent=1 // loop_footer_branch
      %20 = sbr.rel target = $region3
    $region8: #{tpu_custom_call.1} parent=1 // loop_exit
      _
    %565 = vsyncpa [#allocation5], 1
    %s566 = scalar_lea.sflag [#allocation5], 1
    %567 = vsyncpa %s566, 1
    %568 = vsyncpa [#allocation8], 1
    %s569 = scalar_lea.sflag [#allocation8], 1
    %570 = vsyncpa %s569, 1
    %571 = vsyncpa [#allocation6], 1
    %s572 = scalar_lea.sflag [#allocation6], 1
    %573 = vsyncpa %s572, 1

</llo_original>
